<compile_context>
chip_gen: v7x
topology: tpu7x:2x2x1
jax: 0.10.0
libtpu: 0.0.40
codegen_flags: <defaults>
</compile_context>

<pallas_src>
import functools

import jax
import jax.numpy as jnp
from jax.experimental import pallas as pl
from jax.experimental.pallas import tpu as pltpu


def _mlp_kernel(x_ref, w1_ref, b1_ref, w2_ref, b2_ref, w3_ref, b3_ref, o_ref,
                *, act_dtype):
    # x_ref: (4, T) f32      w1: (10, 4) f32   b1: (10, 1) f32
    #                        w2: (10, 10) f32|bf16,  b2: (10, 1) f32
    #                        w3: (3, 10)  f32|bf16,  b3: (3, 1)  f32
    # o_ref: (3, T) f32  -- batch on the lane axis throughout.
    x = x_ref[...]

    z1 = jnp.dot(w1_ref[...], x, preferred_element_type=jnp.float32) + b1_ref[...]
    h1 = jnp.tanh(z1.astype(act_dtype))                      # (10, T)

    z2 = jnp.dot(w2_ref[...], h1, preferred_element_type=jnp.float32) + b2_ref[...]
    h2 = jnp.tanh(z2.astype(act_dtype))                      # (10, T)

    logits = (
        jnp.dot(w3_ref[...], h2, preferred_element_type=jnp.float32) + b3_ref[...]
    )                                                        # (3, T), always f32

    # Numerically stable softmax over the 3 feature rows (sublane axis), f32.
    # Explicit row slices keep this on the VPU (2 maximums / 2 adds) instead of a
    # cross-lane/XLU reduction; divide becomes an EUP reciprocal + Newton step.
    r0 = logits[0:1, :]
    r1 = logits[1:2, :]
    r2 = logits[2:3, :]
    m = jnp.maximum(jnp.maximum(r0, r1), r2)                 # (1, T)

    e = jnp.exp(logits - m)                                  # (3, T)
    denom = e[0:1, :] + e[1:2, :] + e[2:3, :]                # (1, T), in [1, 3]

    inv = pl.reciprocal(denom, approx=True)                  # EUP vrcp (idle slot)
    inv = inv * (2.0 - denom * inv)                          # Newton step -> ~f32

    o_ref[...] = e * inv                                     # lane-dense (3, T) store


def _round_up(n: int, m: int) -> int:
    return ((n + m - 1) // m) * m


def _cdiv(a: int, b: int) -> int:
    return (a + b - 1) // b


def _auto_act_dtype():
    """bf16 activations on v6e/v7x (bf16 VPU/EUP + bf16-native MXU); f32 elsewhere."""
    try:
        kind = jax.devices()[0].device_kind.lower()
    except Exception:
        return jnp.float32
    if "v6" in kind or "v7" in kind:
        return jnp.bfloat16
    return jnp.float32


@functools.partial(jax.jit, static_argnames=("tile_b", "act_dtype"))
def net_forward(x, params, *, tile_b: int = 32768, act_dtype=None):
    """x: (B, 4) float32 -> (B, 3) float32 softmax probabilities.

    params = (w1, b1, w2, b2, w3, b3) with weights stored (out, in) and biases
    (out, 1), i.e. exactly PyTorch's nn.Linear layout.
    """
    if act_dtype is None:
        act_dtype = _auto_act_dtype()
    act_dtype = jnp.dtype(act_dtype)

    w1, b1, w2, b2, w3, b3 = params
    B = x.shape[0]

    # Tile selection:
    #  * large tiles amortize the ~0.35 us per-grid-step overhead,
    #  * tile ~= ceil(B / n_tiles) rounded to 128 keeps the last tile mostly real,
    #  * >= 2 grid steps for medium/large batches so both v7x TensorCores get work.
    n_tiles = max(1, _cdiv(B, tile_b))
    if n_tiles < 2 and B > 256:
        n_tiles = 2
    tile = _round_up(_cdiv(B, n_tiles), 128)
    bp = n_tiles * tile

    # Single fused pad+transpose (layout plumbing; padded columns are zeros and
    # compute harmless, finite values that are sliced off at the end).
    # TODO(synk): keep data feature-major end-to-end upstream to drop this pass.
    xt = jnp.pad(x, ((0, bp - B), (0, 0))).T                  # (4, bp)

    if act_dtype == jnp.dtype(jnp.bfloat16):
        # MXU-native bf16 for the 2nd/3rd matmuls; biases + softmax stay f32.
        w2 = w2.astype(jnp.bfloat16)
        w3 = w3.astype(jnp.bfloat16)

    const2 = lambda i: (0, 0)                                 # weights stay VMEM-resident

    flops = 2 * (10 * 4 + 10 * 10 + 3 * 10) * bp
    transcendentals = (16 + 16 + 8 + 1) * bp                  # sublane-padded rows (advisory)
    bytes_accessed = (4 + 3) * 4 * bp + 4 * (10 * 4 + 10 + 10 * 10 + 10 + 3 * 10 + 3)

    out_t = pl.pallas_call(
        functools.partial(_mlp_kernel, act_dtype=act_dtype),
        out_shape=jax.ShapeDtypeStruct((3, bp), jnp.float32),
        grid=(n_tiles,),
        in_specs=[
            pl.BlockSpec((4, tile), lambda i: (0, i)),        # x tile: double-buffered
            pl.BlockSpec((10, 4), const2),                    # w1
            pl.BlockSpec((10, 1), const2),                    # b1
            pl.BlockSpec((10, 10), const2),                   # w2
            pl.BlockSpec((10, 1), const2),                    # b2
            pl.BlockSpec((3, 10), const2),                    # w3
            pl.BlockSpec((3, 1), const2),                     # b3
        ],
        out_specs=pl.BlockSpec((3, tile), lambda i: (0, i)),
        compiler_params=pltpu.CompilerParams(
            dimension_semantics=("parallel",),
            vmem_limit_bytes=48 * 1024 * 1024,                # big tile fits with margin on v7x
        ),
        cost_estimate=pl.CostEstimate(
            flops=flops,
            transcendentals=transcendentals,
            bytes_accessed=bytes_accessed,
        ),
    )(xt, w1, b1, w2, b2, w3, b3)

    return out_t[:, :B].T                                     # fused slice + transpose


def init_params(key):
    """Deterministic init mimicking nn.Linear's uniform(-1/sqrt(fan_in), +).

    Weights stored (out_features, in_features), biases (out_features, 1).
    """
    def linear(key, fan_in, fan_out):
        kw, kb = jax.random.split(key)
        bound = 1.0 / jnp.sqrt(jnp.float32(fan_in))
        w = jax.random.uniform(kw, (fan_out, fan_in), jnp.float32, -bound, bound)
        b = jax.random.uniform(kb, (fan_out, 1), jnp.float32, -bound, bound)
        return w, b

    k1, k2, k3 = jax.random.split(key, 3)
    w1, b1 = linear(k1, 4, 10)
    w2, b2 = linear(k2, 10, 10)
    w3, b3 = linear(k3, 10, 3)
    return (w1, b1, w2, b2, w3, b3)


def _reference_forward(x, params):
    """Pure-JAX f32 reference matching the PyTorch module."""
    w1, b1, w2, b2, w3, b3 = params
    h1 = jnp.tanh(x @ w1.T + b1[:, 0])
    h2 = jnp.tanh(h1 @ w2.T + b2[:, 0])
    logits = h2 @ w3.T + b3[:, 0]
    return jax.nn.softmax(logits, axis=1)


if __name__ == "__main__":
    key = jax.random.PRNGKey(0)
    k_params, k_x, k_x2 = jax.random.split(key, 3)

    params = init_params(k_params)

    act_dtype = _auto_act_dtype()
    # bf16 tanh/MXU path (v6e/v7x) shifts output probabilities at the ~1e-2 level
    # vs the f32 reference; f32 path matches to ~1e-4.
    atol = 1e-4 if act_dtype == jnp.float32 else 3e-2

    # --- small batch (single tile) ---
    x = jax.random.normal(k_x, (8, 4), dtype=jnp.float32)     # batch=8, in_features=4
    out = jax.block_until_ready(net_forward(x, params))
    ref = _reference_forward(x, params)
    assert out.shape == (8, 3)
    assert jnp.allclose(jnp.sum(out, axis=1), 1.0, atol=1e-4)
    assert jnp.allclose(out, ref, atol=atol)

    # --- multi-tile + padding path (forces grid=(2,) and a padded last tile) ---
    x2 = jax.random.normal(k_x2, (300, 4), dtype=jnp.float32)
    out2 = jax.block_until_ready(net_forward(x2, params, tile_b=256))
    ref2 = _reference_forward(x2, params)
    assert out2.shape == (300, 3)
    assert jnp.allclose(jnp.sum(out2, axis=1), 1.0, atol=1e-4)
    assert jnp.allclose(out2, ref2, atol=atol)

    print("KERNEL_OK")
</pallas_src>

<mosaic_0001>
module attributes {stable_mosaic.version = 11 : i64} {
  func.func @_mlp_kernel(%arg0: i32, %arg1: memref<4x128xf32, #tpu.memory_space<vmem>>, %arg2: memref<10x4xf32, #tpu.memory_space<vmem>>, %arg3: memref<10x1xf32, #tpu.memory_space<vmem>>, %arg4: memref<10x10xf32, #tpu.memory_space<vmem>>, %arg5: memref<10x1xf32, #tpu.memory_space<vmem>>, %arg6: memref<3x10xf32, #tpu.memory_space<vmem>>, %arg7: memref<3x1xf32, #tpu.memory_space<vmem>>, %arg8: memref<3x128xf32, #tpu.memory_space<vmem>>) attributes {dimension_semantics = [#tpu.dimension_semantics<parallel>], iteration_bounds = array<i64: 1>, scalar_prefetch = 0 : i64, scratch_operands = 0 : i64, tpu.core_type = #tpu.core_type<tc>, window_params = [{transform_indices = @transform_0, window_bounds = array<i64: 4, 128>}, {pipeline_mode = #tpu.pipeline_mode<synchronous>, transform_indices = @transform_1, window_bounds = array<i64: 10, 4>}, {pipeline_mode = #tpu.pipeline_mode<synchronous>, transform_indices = @transform_2, window_bounds = array<i64: 10, 1>}, {pipeline_mode = #tpu.pipeline_mode<synchronous>, transform_indices = @transform_3, window_bounds = array<i64: 10, 10>}, {pipeline_mode = #tpu.pipeline_mode<synchronous>, transform_indices = @transform_4, window_bounds = array<i64: 10, 1>}, {pipeline_mode = #tpu.pipeline_mode<synchronous>, transform_indices = @transform_5, window_bounds = array<i64: 3, 10>}, {pipeline_mode = #tpu.pipeline_mode<synchronous>, transform_indices = @transform_6, window_bounds = array<i64: 3, 1>}, {transform_indices = @transform_7, window_bounds = array<i64: 3, 128>}]} {
    %c0 = arith.constant 0 : index
    %c0_0 = arith.constant 0 : index
    %0 = vector.load %arg1[%c0, %c0_0] : memref<4x128xf32, #tpu.memory_space<vmem>>, vector<4x128xf32>
    %c0_1 = arith.constant 0 : index
    %c0_2 = arith.constant 0 : index
    %1 = vector.load %arg2[%c0_1, %c0_2] : memref<10x4xf32, #tpu.memory_space<vmem>>, vector<10x4xf32>
    %cst = arith.constant dense<0.000000e+00> : vector<10x128xf32>
    %2 = tpu.matmul %1, %0, %cst {dimension_numbers = #tpu.dot_dimension_numbers<[1], [0], [0], [1], [0, 0, 1, 1], [], []>} : vector<10x4xf32>, vector<4x128xf32>, vector<10x128xf32> -> vector<10x128xf32>
    %c0_3 = arith.constant 0 : index
    %c0_4 = arith.constant 0 : index
    %3 = vector.load %arg3[%c0_3, %c0_4] : memref<10x1xf32, #tpu.memory_space<vmem>>, vector<10x1xf32>
    %4 = vector.broadcast %3 : vector<10x1xf32> to vector<10x128xf32>
    %5 = arith.addf %2, %4 : vector<10x128xf32>
    %6 = math.tanh %5 : vector<10x128xf32>
    %c0_5 = arith.constant 0 : index
    %c0_6 = arith.constant 0 : index
    %7 = vector.load %arg4[%c0_5, %c0_6] : memref<10x10xf32, #tpu.memory_space<vmem>>, vector<10x10xf32>
    %cst_7 = arith.constant dense<0.000000e+00> : vector<10x128xf32>
    %8 = tpu.matmul %7, %6, %cst_7 {dimension_numbers = #tpu.dot_dimension_numbers<[1], [0], [0], [1], [0, 0, 1, 1], [], []>} : vector<10x10xf32>, vector<10x128xf32>, vector<10x128xf32> -> vector<10x128xf32>
    %c0_8 = arith.constant 0 : index
    %c0_9 = arith.constant 0 : index
    %9 = vector.load %arg5[%c0_8, %c0_9] : memref<10x1xf32, #tpu.memory_space<vmem>>, vector<10x1xf32>
    %10 = vector.broadcast %9 : vector<10x1xf32> to vector<10x128xf32>
    %11 = arith.addf %8, %10 : vector<10x128xf32>
    %12 = math.tanh %11 : vector<10x128xf32>
    %c0_10 = arith.constant 0 : index
    %c0_11 = arith.constant 0 : index
    %13 = vector.load %arg6[%c0_10, %c0_11] : memref<3x10xf32, #tpu.memory_space<vmem>>, vector<3x10xf32>
    %cst_12 = arith.constant dense<0.000000e+00> : vector<3x128xf32>
    %14 = tpu.matmul %13, %12, %cst_12 {dimension_numbers = #tpu.dot_dimension_numbers<[1], [0], [0], [1], [0, 0, 1, 1], [], []>} : vector<3x10xf32>, vector<10x128xf32>, vector<3x128xf32> -> vector<3x128xf32>
    %c0_13 = arith.constant 0 : index
    %c0_14 = arith.constant 0 : index
    %15 = vector.load %arg7[%c0_13, %c0_14] : memref<3x1xf32, #tpu.memory_space<vmem>>, vector<3x1xf32>
    %16 = vector.broadcast %15 : vector<3x1xf32> to vector<3x128xf32>
    %17 = arith.addf %14, %16 : vector<3x128xf32>
    %18 = vector.extract_strided_slice %17 {offsets = [0, 0], sizes = [1, 128], strides = [1, 1]} : vector<3x128xf32> to vector<1x128xf32>
    %19 = vector.extract_strided_slice %17 {offsets = [1, 0], sizes = [1, 128], strides = [1, 1]} : vector<3x128xf32> to vector<1x128xf32>
    %20 = vector.extract_strided_slice %17 {offsets = [2, 0], sizes = [1, 128], strides = [1, 1]} : vector<3x128xf32> to vector<1x128xf32>
    %21 = arith.maximumf %18, %19 : vector<1x128xf32>
    %22 = arith.maximumf %21, %20 : vector<1x128xf32>
    %23 = vector.broadcast %22 : vector<1x128xf32> to vector<3x128xf32>
    %24 = arith.subf %17, %23 : vector<3x128xf32>
    %25 = math.exp %24 : vector<3x128xf32>
    %26 = vector.extract_strided_slice %25 {offsets = [0, 0], sizes = [1, 128], strides = [1, 1]} : vector<3x128xf32> to vector<1x128xf32>
    %27 = vector.extract_strided_slice %25 {offsets = [1, 0], sizes = [1, 128], strides = [1, 1]} : vector<3x128xf32> to vector<1x128xf32>
    %28 = arith.addf %26, %27 : vector<1x128xf32>
    %29 = vector.extract_strided_slice %25 {offsets = [2, 0], sizes = [1, 128], strides = [1, 1]} : vector<3x128xf32> to vector<1x128xf32>
    %30 = arith.addf %28, %29 : vector<1x128xf32>
    %31 = tpu.reciprocal %30 {approx = true} : vector<1x128xf32> -> vector<1x128xf32>
    %32 = arith.mulf %30, %31 : vector<1x128xf32>
    %cst_15 = arith.constant 2.000000e+00 : f32
    %33 = vector.broadcast %cst_15 : f32 to vector<1x128xf32>
    %34 = arith.subf %33, %32 : vector<1x128xf32>
    %35 = arith.mulf %31, %34 : vector<1x128xf32>
    %36 = vector.broadcast %35 : vector<1x128xf32> to vector<3x128xf32>
    %37 = arith.mulf %25, %36 : vector<3x128xf32>
    %c0_16 = arith.constant 0 : index
    %c0_17 = arith.constant 0 : index
    %38 = vector.load %arg8[%c0_16, %c0_17] : memref<3x128xf32, #tpu.memory_space<vmem>>, vector<3x128xf32>
    tpu.vector_store %arg8[%c0_16, %c0_17], %37 {strides = array<i32>} : memref<3x128xf32, #tpu.memory_space<vmem>>, vector<3x128xf32>,
    return
  }
  func.func @transform_0(%arg0: i32) -> (i32, i32) {
    %c0_i32 = arith.constant 0 : i32
    %c0_i32_0 = arith.constant 0 : i32
    return %c0_i32, %arg0 : i32, i32
  }
  func.func @transform_1(%arg0: i32) -> (i32, i32) {
    %c0_i32 = arith.constant 0 : i32
    %c0_i32_0 = arith.constant 0 : i32
    %c0_i32_1 = arith.constant 0 : i32
    return %c0_i32, %c0_i32_0 : i32, i32
  }
  func.func @transform_2(%arg0: i32) -> (i32, i32) {
    %c0_i32 = arith.constant 0 : i32
    %c0_i32_0 = arith.constant 0 : i32
    %c0_i32_1 = arith.constant 0 : i32
    return %c0_i32, %c0_i32_0 : i32, i32
  }
  func.func @transform_3(%arg0: i32) -> (i32, i32) {
    %c0_i32 = arith.constant 0 : i32
    %c0_i32_0 = arith.constant 0 : i32
    %c0_i32_1 = arith.constant 0 : i32
    return %c0_i32, %c0_i32_0 : i32, i32
  }
  func.func @transform_4(%arg0: i32) -> (i32, i32) {
    %c0_i32 = arith.constant 0 : i32
    %c0_i32_0 = arith.constant 0 : i32
    %c0_i32_1 = arith.constant 0 : i32
    return %c0_i32, %c0_i32_0 : i32, i32
  }
  func.func @transform_5(%arg0: i32) -> (i32, i32) {
    %c0_i32 = arith.constant 0 : i32
    %c0_i32_0 = arith.constant 0 : i32
    %c0_i32_1 = arith.constant 0 : i32
    return %c0_i32, %c0_i32_0 : i32, i32
  }
  func.func @transform_6(%arg0: i32) -> (i32, i32) {
    %c0_i32 = arith.constant 0 : i32
    %c0_i32_0 = arith.constant 0 : i32
    %c0_i32_1 = arith.constant 0 : i32
    return %c0_i32, %c0_i32_0 : i32, i32
  }
  func.func @transform_7(%arg0: i32) -> (i32, i32) {
    %c0_i32 = arith.constant 0 : i32
    %c0_i32_0 = arith.constant 0 : i32
    return %c0_i32, %arg0 : i32, i32
  }
}

</mosaic_0001>

<llo_original>
// kernel: net_forward.1
$region0: #{net_forward.1}
  #allocation0 [shape = 'u32[]', space=smem, size = 0x4, offset = 0x4, fixed_abs, tag = 'smem constant byte address 0x4 - core index']
  #allocation1 [shape = 'u32[144,128]{1,0:T(1,128)}', space=vmem, size = 0x12000, scoped, tag = 'internal scratch']
  %s0 = inlined_call_operand.vmem [shape: f32[4,128], index: 0, kind: input, shape index: {}]
  %s1 = inlined_call_operand.vmem [shape: f32[10,4], index: 1, kind: input, shape index: {}]
  %s2 = inlined_call_operand.vmem [shape: f32[10,1], index: 2, kind: input, shape index: {}]
  %s3 = inlined_call_operand.vmem [shape: f32[10,10], index: 3, kind: input, shape index: {}]
  %s4 = inlined_call_operand.vmem [shape: f32[10,1], index: 4, kind: input, shape index: {}]
  %s5 = inlined_call_operand.vmem [shape: f32[3,10], index: 5, kind: input, shape index: {}]
  %s6 = inlined_call_operand.vmem [shape: f32[3,1], index: 6, kind: input, shape index: {}]
  %s7 = inlined_call_operand.vmem [shape: f32[3,128], index: 7, kind: output, shape index: {}]
  %s8 = sld [smem:[#allocation0]]
  $region38: #{net_forward.1} parent=0
    _
  %s10 = ssub.s32 1, %s8
  %s11 = scalar_select 0, %s10, %s8
  // Predicated region
  $region2: #{net_forward.1} parent=0 // pred_check
    _
  $region3: #{net_forward.1} parent=0 // pred_check_branch
    %13 = sbr.rel (0) target = $region5
  $region4: #{net_forward.1} parent=0 // pred_region
    _
  $region5: #{net_forward.1} parent=0 // pred_fallthru
    _
  // Predicated region
  $region6: #{net_forward.1} parent=0 // pred_check
    _
  $region7: #{net_forward.1} parent=0 // pred_check_branch
    %15 = sbr.rel (0) target = $region9
  $region8: #{net_forward.1} parent=0 // pred_region
    _
  $region9: #{net_forward.1} parent=0 // pred_fallthru
    _
  // Predicated region
  $region10: #{net_forward.1} parent=0 // pred_check
    _
  $region11: #{net_forward.1} parent=0 // pred_check_branch
    %17 = sbr.rel (0) target = $region13
  $region12: #{net_forward.1} parent=0 // pred_region
    _
  $region13: #{net_forward.1} parent=0 // pred_fallthru
    _
  // Predicated region
  $region14: #{net_forward.1} parent=0 // pred_check
    _
  $region15: #{net_forward.1} parent=0 // pred_check_branch
    %19 = sbr.rel (0) target = $region17
  $region16: #{net_forward.1} parent=0 // pred_region
    _
  $region17: #{net_forward.1} parent=0 // pred_fallthru
    _
  // Predicated region
  $region18: #{net_forward.1} parent=0 // pred_check
    _
  $region19: #{net_forward.1} parent=0 // pred_check_branch
    %21 = sbr.rel (0) target = $region21
  $region20: #{net_forward.1} parent=0 // pred_region
    _
  $region21: #{net_forward.1} parent=0 // pred_fallthru
    _
  // Predicated region
  $region22: #{net_forward.1} parent=0 // pred_check
    _
  $region23: #{net_forward.1} parent=0 // pred_check_branch
    %23 = sbr.rel (0) target = $region25
  $region24: #{net_forward.1} parent=0 // pred_region
    _
  $region25: #{net_forward.1} parent=0 // pred_fallthru
    _
  // Predicated region
  $region26: #{net_forward.1} parent=0 // pred_check
    _
  $region27: #{net_forward.1} parent=0 // pred_check_branch
    %25 = sbr.rel (0) target = $region29
  $region28: #{net_forward.1} parent=0 // pred_region
    _
  $region29: #{net_forward.1} parent=0 // pred_fallthru
    _
  %v26 = vld [vmem:[%s0] sm:$0xf]
  %v27 = vld [vmem:[%s1] sm:$0xff]
  %v28 = vld [vmem:[%s1 + $0x8] sm:$0x3]
  %v29 = vld [vmem:[%s2] sm:$0xff]
  %v30 = vld [vmem:[%s2 + $0x8] sm:$0x3]
  %32 = vset.pattern.permute.xlu0 0
  %33 = vperm.xlu0 %32, %v29
  %v34 = vpop.permute.xlu0 %33
  %37 = vset.pattern.permute.xlu0 0
  %38 = vperm.xlu0 %37, %v30
  %v39 = vpop.permute.xlu0 %38
  %vm41 = vcmask 31744
  %v43 = vsel %vm41, %v27, 0
  %v46 = vsel %vm41, %v28, 0
  %vm48 = vcmask 1043456
  %v50 = vsel %vm48, %v26, 0
  %52 = vmatprep.subr.mxu0 0.0
  %53 = vmatpush1.msra.mxu0 %v50
  %54 = vmatprep.subr.mxu0 0.0
  %55 = vmatpush1.msra.mxu0 0.0
  %56 = vmatprep.subr.mxu0 0.0
  %57 = vmatpush1.msra.mxu0 0.0
  %58 = vmatprep.subr.mxu0 0.0
  %59 = vmatpush1.msra.mxu0 0.0
  %60 = vmatprep.subr.mxu0 0.0
  %61 = vmatpush1.msra.mxu0 0.0
  %62 = vmatprep.subr.mxu0 0.0
  %63 = vmatpush1.msra.mxu0 0.0
  %64 = vmatprep.subr.mxu0 0.0
  %65 = vmatpush1.msra.mxu0 0.0
  %66 = vmatprep.subr.mxu0 0.0
  %67 = vmatpush1.msra.mxu0 0.0
  %68 = vmatprep.subr.mxu0 0.0
  %69 = vmatpush1.msra.mxu0 0.0
  %70 = vmatprep.subr.mxu0 0.0
  %71 = vmatpush1.msra.mxu0 0.0
  %72 = vmatprep.subr.mxu0 0.0
  %73 = vmatpush1.msra.mxu0 0.0
  %74 = vmatprep.subr.mxu0 0.0
  %75 = vmatpush1.msra.mxu0 0.0
  %76 = vmatprep.subr.mxu0 0.0
  %77 = vmatpush1.msra.mxu0 0.0
  %78 = vmatprep.subr.mxu0 0.0
  %79 = vmatpush1.msra.mxu0 0.0
  %80 = vmatprep.subr.mxu0 0.0
  %81 = vmatpush1.msra.mxu0 0.0
  %82 = vmatprep.subr.mxu0 0.0
  %83 = vmatpush1.msra.mxu0 0.0
  %84 = vmatprep.subr.mxu0 0.0
  %85 = vmatpush1.msra.mxu0 0.0
  %86 = vmatprep.subr.mxu0 0.0
  %87 = vmatpush1.msra.mxu0 0.0
  %88 = vmatprep.subr.mxu0 0.0
  %89 = vmatpush1.msra.mxu0 0.0
  %90 = vmatprep.subr.mxu0 0.0
  %91 = vmatpush1.msra.mxu0 0.0
  %92 = vmatprep.subr.mxu0 0.0
  %93 = vmatpush1.msra.mxu0 0.0
  %94 = vmatprep.subr.mxu0 0.0
  %95 = vmatpush1.msra.mxu0 0.0
  %96 = vmatprep.subr.mxu0 0.0
  %97 = vmatpush1.msra.mxu0 0.0
  %98 = vmatprep.subr.mxu0 0.0
  %99 = vmatpush1.msra.mxu0 0.0
  %100 = vmatprep.subr.mxu0 0.0
  %101 = vmatpush1.msra.mxu0 0.0
  %102 = vmatprep.subr.mxu0 0.0
  %103 = vmatpush1.msra.mxu0 0.0
  %104 = vmatprep.subr.mxu0 0.0
  %105 = vmatpush1.msra.mxu0 0.0
  %106 = vmatprep.subr.mxu0 0.0
  %107 = vmatpush1.msra.mxu0 0.0
  %108 = vmatprep.subr.mxu0 0.0
  %109 = vmatpush1.msra.mxu0 0.0
  %110 = vmatprep.subr.mxu0 0.0
  %111 = vmatpush1.msra.mxu0 0.0
  %112 = vmatprep.subr.mxu0 0.0
  %113 = vmatpush1.msra.mxu0 0.0
  %114 = vmatprep.subr.mxu0 0.0
  %115 = vmatpush1.msra.mxu0 0.0
  %116 = vmatprep.mubr.f32.mxu0 0.0
  %117 = vmatmul.mubr.f32.gmra.mrb[0].mxu0 %v43
  %v118 = vpop.f32.mrb[0].mxu0
  %v119 = vadd.f32 %v34, %v118
  %v120 = vpop.f32.mrb[0].mxu0
  %121 = vmatprep.mubr.f32.mxu0 0.0
  %122 = vmatmul.mubr.f32.gmra.mrb[0].mxu0 %v46
  %v123 = vpop.f32.mrb[0].mxu0
  %v124 = vadd.f32 %v39, %v123
  %v125 = vpop.f32.mrb[0].mxu0
  %126 = vdwg.mxu0
  %v127 = vtanh.pop %v119
  %v128 = vtanh.pop %v124
  %v129 = vld [vmem:[%s3] sm:$0xff]
  %v130 = vld [vmem:[%s3 + $0x8] sm:$0x3]
  %v131 = vld [vmem:[%s4] sm:$0xff]
  %v132 = vld [vmem:[%s4 + $0x8] sm:$0x3]
  %134 = vset.pattern.permute.xlu0 0
  %135 = vperm.xlu0 %134, %v131
  %v136 = vpop.permute.xlu0 %135
  %139 = vset.pattern.permute.xlu0 0
  %140 = vperm.xlu0 %139, %v132
  %v141 = vpop.permute.xlu0 %140
  %vm143 = vcmask 80896
  %v145 = vsel %vm143, %v129, 0
  %v148 = vsel %vm143, %v130, 0
  %vm150 = vcmask 1041408
  %v152 = vsel %vm150, %v128, 0
  %154 = vmatprep.subr.mxu0 0.0
  %155 = vmatpush1.msra.mxu0 %v127
  %156 = vmatprep.subr.mxu0 0.0
  %157 = vmatpush1.msra.mxu0 %v152
  %158 = vmatprep.subr.mxu0 0.0
  %159 = vmatpush1.msra.mxu0 0.0
  %160 = vmatprep.subr.mxu0 0.0
  %161 = vmatpush1.msra.mxu0 0.0
  %162 = vmatprep.subr.mxu0 0.0
  %163 = vmatpush1.msra.mxu0 0.0
  %164 = vmatprep.subr.mxu0 0.0
  %165 = vmatpush1.msra.mxu0 0.0
  %166 = vmatprep.subr.mxu0 0.0
  %167 = vmatpush1.msra.mxu0 0.0
  %168 = vmatprep.subr.mxu0 0.0
  %169 = vmatpush1.msra.mxu0 0.0
  %170 = vmatprep.subr.mxu0 0.0
  %171 = vmatpush1.msra.mxu0 0.0
  %172 = vmatprep.subr.mxu0 0.0
  %173 = vmatpush1.msra.mxu0 0.0
  %174 = vmatprep.subr.mxu0 0.0
  %175 = vmatpush1.msra.mxu0 0.0
  %176 = vmatprep.subr.mxu0 0.0
  %177 = vmatpush1.msra.mxu0 0.0
  %178 = vmatprep.subr.mxu0 0.0
  %179 = vmatpush1.msra.mxu0 0.0
  %180 = vmatprep.subr.mxu0 0.0
  %181 = vmatpush1.msra.mxu0 0.0
  %182 = vmatprep.subr.mxu0 0.0
  %183 = vmatpush1.msra.mxu0 0.0
  %184 = vmatprep.subr.mxu0 0.0
  %185 = vmatpush1.msra.mxu0 0.0
  %186 = vmatprep.subr.mxu0 0.0
  %187 = vmatpush1.msra.mxu0 0.0
  %188 = vmatprep.subr.mxu0 0.0
  %189 = vmatpush1.msra.mxu0 0.0
  %190 = vmatprep.subr.mxu0 0.0
  %191 = vmatpush1.msra.mxu0 0.0
  %192 = vmatprep.subr.mxu0 0.0
  %193 = vmatpush1.msra.mxu0 0.0
  %194 = vmatprep.subr.mxu0 0.0
  %195 = vmatpush1.msra.mxu0 0.0
  %196 = vmatprep.subr.mxu0 0.0
  %197 = vmatpush1.msra.mxu0 0.0
  %198 = vmatprep.subr.mxu0 0.0
  %199 = vmatpush1.msra.mxu0 0.0
  %200 = vmatprep.subr.mxu0 0.0
  %201 = vmatpush1.msra.mxu0 0.0
  %202 = vmatprep.subr.mxu0 0.0
  %203 = vmatpush1.msra.mxu0 0.0
  %204 = vmatprep.subr.mxu0 0.0
  %205 = vmatpush1.msra.mxu0 0.0
  %206 = vmatprep.subr.mxu0 0.0
  %207 = vmatpush1.msra.mxu0 0.0
  %208 = vmatprep.subr.mxu0 0.0
  %209 = vmatpush1.msra.mxu0 0.0
  %210 = vmatprep.subr.mxu0 0.0
  %211 = vmatpush1.msra.mxu0 0.0
  %212 = vmatprep.subr.mxu0 0.0
  %213 = vmatpush1.msra.mxu0 0.0
  %214 = vmatprep.subr.mxu0 0.0
  %215 = vmatpush1.msra.mxu0 0.0
  %216 = vmatprep.subr.mxu0 0.0
  %217 = vmatpush1.msra.mxu0 0.0
  %218 = vmatprep.mubr.f32.mxu0 0.0
  %219 = vmatmul.mubr.f32.gmra.mrb[0].mxu0 %v145
  %v220 = vpop.f32.mrb[0].mxu0
  %v221 = vadd.f32 %v136, %v220
  %v222 = vpop.f32.mrb[0].mxu0
  %223 = vmatprep.mubr.f32.mxu0 0.0
  %224 = vmatmul.mubr.f32.gmra.mrb[0].mxu0 %v148
  %v225 = vpop.f32.mrb[0].mxu0
  %v226 = vadd.f32 %v141, %v225
  %v227 = vpop.f32.mrb[0].mxu0
  %228 = vdwg.mxu0
  %v229 = vtanh.pop %v221
  %v230 = vtanh.pop %v226
  %v231 = vld [vmem:[%s5] sm:$0x7]
  %v232 = vld [vmem:[%s6] sm:$0x7]
  %234 = vset.pattern.permute.xlu0 0
  %235 = vperm.xlu0 %234, %v232
  %v236 = vpop.permute.xlu0 %235
  %v239 = vsel %vm143, %v231, 0
  %v242 = vsel %vm150, %v230, 0
  %244 = vmatprep.subr.mxu0 0.0
  %245 = vmatpush1.msra.mxu0 %v229
  %246 = vmatprep.subr.mxu0 0.0
  %247 = vmatpush1.msra.mxu0 %v242
  %248 = vmatprep.subr.mxu0 0.0
  %249 = vmatpush1.msra.mxu0 0.0
  %250 = vmatprep.subr.mxu0 0.0
  %251 = vmatpush1.msra.mxu0 0.0
  %252 = vmatprep.subr.mxu0 0.0
  %253 = vmatpush1.msra.mxu0 0.0
  %254 = vmatprep.subr.mxu0 0.0
  %255 = vmatpush1.msra.mxu0 0.0
  %256 = vmatprep.subr.mxu0 0.0
  %257 = vmatpush1.msra.mxu0 0.0
  %258 = vmatprep.subr.mxu0 0.0
  %259 = vmatpush1.msra.mxu0 0.0
  %260 = vmatprep.subr.mxu0 0.0
  %261 = vmatpush1.msra.mxu0 0.0
  %262 = vmatprep.subr.mxu0 0.0
  %263 = vmatpush1.msra.mxu0 0.0
  %264 = vmatprep.subr.mxu0 0.0
  %265 = vmatpush1.msra.mxu0 0.0
  %266 = vmatprep.subr.mxu0 0.0
  %267 = vmatpush1.msra.mxu0 0.0
  %268 = vmatprep.subr.mxu0 0.0
  %269 = vmatpush1.msra.mxu0 0.0
  %270 = vmatprep.subr.mxu0 0.0
  %271 = vmatpush1.msra.mxu0 0.0
  %272 = vmatprep.subr.mxu0 0.0
  %273 = vmatpush1.msra.mxu0 0.0
  %274 = vmatprep.subr.mxu0 0.0
  %275 = vmatpush1.msra.mxu0 0.0
  %276 = vmatprep.subr.mxu0 0.0
  %277 = vmatpush1.msra.mxu0 0.0
  %278 = vmatprep.subr.mxu0 0.0
  %279 = vmatpush1.msra.mxu0 0.0
  %280 = vmatprep.subr.mxu0 0.0
  %281 = vmatpush1.msra.mxu0 0.0
  %282 = vmatprep.subr.mxu0 0.0
  %283 = vmatpush1.msra.mxu0 0.0
  %284 = vmatprep.subr.mxu0 0.0
  %285 = vmatpush1.msra.mxu0 0.0
  %286 = vmatprep.subr.mxu0 0.0
  %287 = vmatpush1.msra.mxu0 0.0
  %288 = vmatprep.subr.mxu0 0.0
  %289 = vmatpush1.msra.mxu0 0.0
  %290 = vmatprep.subr.mxu0 0.0
  %291 = vmatpush1.msra.mxu0 0.0
  %292 = vmatprep.subr.mxu0 0.0
  %293 = vmatpush1.msra.mxu0 0.0
  %294 = vmatprep.subr.mxu0 0.0
  %295 = vmatpush1.msra.mxu0 0.0
  %296 = vmatprep.subr.mxu0 0.0
  %297 = vmatpush1.msra.mxu0 0.0
  %298 = vmatprep.subr.mxu0 0.0
  %299 = vmatpush1.msra.mxu0 0.0
  %300 = vmatprep.subr.mxu0 0.0
  %301 = vmatpush1.msra.mxu0 0.0
  %302 = vmatprep.subr.mxu0 0.0
  %303 = vmatpush1.msra.mxu0 0.0
  %304 = vmatprep.subr.mxu0 0.0
  %305 = vmatpush1.msra.mxu0 0.0
  %306 = vmatprep.subr.mxu0 0.0
  %307 = vmatpush1.msra.mxu0 0.0
  %308 = vmatprep.mubr.f32.mxu0 0.0
  %309 = vmatmul.mubr.f32.gmra.mrb[0].mxu0 %v239
  %v310 = vpop.f32.mrb[0].mxu0
  %v311 = vadd.f32 %v236, %v310
  %v312 = vpop.f32.mrb[0].mxu0
  %313 = vdwg.mxu0
  %v315 = vrot.slane %v311, 1
  %v317 = vmax.f32 %v311, %v315
  %v318 = vrot.slane %v311, 2
  %v320 = vmax.f32 %v317, %v318
  %v321 = vlaneseq
  %v322 = vshrl.u32 %v321, 7
  %v323 = vsub.s32 0, %v322
  %v324 = vrot.slane %v320, %v323
  %v325 = vsub.f32 %v311, %v324
  %v326 = vmul.f32 %v325, 1.442695
  %v327 = vpow.pop %v326
  %v329 = vrot.slane %v327, 1
  %v331 = vadd.f32 %v327, %v329
  %v332 = vrot.slane %v327, 2
  %v334 = vadd.f32 %v331, %v332
  %v335 = vrcp.pop %v334
  %v336 = vmul.f32 %v334, %v335
  %v337 = vsub.f32 2.0, %v336
  %v338 = vmul.f32 %v335, %v337
  %v339 = vlaneseq
  %v340 = vshrl.u32 %v339, 7
  %v341 = vsub.s32 0, %v340
  %v342 = vrot.slane %v338, %v341
  %v343 = vmul.f32 %v327, %v342
  %344 = vst [vmem:[%s7] sm:$0x7] %v343
  // Predicated region
  $region30: #{net_forward.1} parent=0 // pred_check
    _
  $region31: #{net_forward.1} parent=0 // pred_check_branch
    %346 = sbr.rel (0) target = $region33
  $region32: #{net_forward.1} parent=0 // pred_region
    _
  $region33: #{net_forward.1} parent=0 // pred_fallthru
    _
  // Predicated region
  $region34: #{net_forward.1} parent=0 // pred_check
    _
  $region35: #{net_forward.1} parent=0 // pred_check_branch
    %348 = sbr.rel (0) target = $region37
  $region36: #{net_forward.1} parent=0 // pred_region
    _
  $region37: #{net_forward.1} parent=0 // pred_fallthru
    _

</llo_original>
